<compile_context>
chip_gen: v5e
topology: v5e:2x2
jax: 0.10.0
libtpu: 0.0.40
codegen_flags: <defaults>
</compile_context>

<pallas_src>
import jax
import jax.numpy as jnp
from jax.experimental import pallas as pl
from jax.experimental.pallas import tpu as pltpu


_LANE = 128                   # f32 lane width (vreg fast axis)
_MIN_ROWS_FOR_SPLIT = 1024    # past this, force >= 2 grid steps for v7x megacore


# ----------------------------------------------------------------------------
# Kernels
# ----------------------------------------------------------------------------
def _linear_n1_kernel(x_ref, w_ref, b_ref, o_ref):
    # n_output == 1 specialization (Boston housing): stay off the MXU.
    #   x_ref: (n_feature, TB)  batch on lanes (lane-dense)
    #   w_ref: (n_feature, 1)   weight column, lane-broadcast by the VPU
    #   b_ref: (1,) in SMEM     single scalar bias
    #   o_ref: (1, TB)          lane-dense output row (unmasked stores)
    acc = jnp.sum(x_ref[...] * w_ref[...], axis=0, keepdims=True)  # XLU reduce
    o_ref[...] = acc + b_ref[0]


def _linear_mxu_kernel(x_ref, w_ref, b_ref, o_ref):
    # General n_output: one MXU matmul  (O, F) @ (F, TB) -> (O, TB), still a
    # lane-dense output tile; bias is a (O, 1) VMEM column broadcast over
    # lanes.  (For tiny n_output the MXU is under-utilized but the kernel is
    # memory-bound either way; the n_output == 1 case uses the VPU path.)
    o_ref[...] = (
        jnp.dot(w_ref[...], x_ref[...], preferred_element_type=jnp.float32)
        + b_ref[...]
    )


# ----------------------------------------------------------------------------
# One-time parameter preparation (load time, NOT per forward call)
# ----------------------------------------------------------------------------
def prepare_params(weight, bias):
    """Convert PyTorch-layout Linear params into kernel-ready layout, once.

    weight: (n_output, n_feature) float32   (PyTorch nn.Linear layout)
    bias:   (n_output,)           float32
    """
    n_output = weight.shape[0]
    weight = jnp.asarray(weight, jnp.float32)
    bias = jnp.asarray(bias, jnp.float32)
    if n_output == 1:
        # Weight as an (n_feature, 1) column (lane-broadcast multiply against
        # the feature-major x tile) and the bias as a single SMEM scalar.
        return weight.T, bias.reshape(1)
    # General path: keep (n_output, n_feature); bias as a (n_output, 1) column.
    return weight, bias.reshape(n_output, 1)


# ----------------------------------------------------------------------------
# Forward pass
# ----------------------------------------------------------------------------
def net_forward(x, w_prepared, b_prepared, *, batch_tile=8192):
    """Pallas equivalent of Net.forward (torch.nn.Linear), f32 throughout."""
    batch, n_feature = x.shape
    n1 = (b_prepared.ndim == 1)                       # n_output == 1 fast path
    n_output = 1 if n1 else b_prepared.shape[0]
    kernel = _linear_n1_kernel if n1 else _linear_mxu_kernel
    bias_space = pltpu.MemorySpace.SMEM if n1 else pltpu.MemorySpace.VMEM

    # Feature-major / lane-dense layout: put the batch axis on lanes.
    x_t = x.T                                          # (n_feature, batch)

    # Clamp the tile to a multiple of the 128-lane width (BlockSpec rule).
    batch_tile = max(_LANE, (batch_tile // _LANE) * _LANE)

    # Lane-align the batch, then pick a tile that (a) caps VMEM per step and
    # (b) yields >= 2 "parallel" grid steps once there is enough work, so both
    # v7x TensorCores participate; on 1-TC v5e/v6e the extra step is ~0.35 us.
    aligned_batch = pl.cdiv(batch, _LANE) * _LANE
    if aligned_batch > batch_tile:
        tile = batch_tile
    elif aligned_batch >= _MIN_ROWS_FOR_SPLIT:
        tile = pl.cdiv(pl.cdiv(aligned_batch, 2), _LANE) * _LANE
    else:
        tile = aligned_batch
    num_tiles = pl.cdiv(aligned_batch, tile)
    padded_batch = num_tiles * tile
    if padded_batch != batch:
        # Zero-pad the ragged tail once in the wrapper; sliced off below.
        x_t = jnp.pad(x_t, ((0, 0), (0, padded_batch - batch)))

    out_t = pl.pallas_call(
        kernel,
        out_shape=jax.ShapeDtypeStruct((n_output, padded_batch), jnp.float32),
        grid=(num_tiles,),
        in_specs=[
            pl.BlockSpec((n_feature, tile), lambda i: (0, i)),
            pl.BlockSpec(w_prepared.shape, lambda i: (0, 0)),
            pl.BlockSpec(memory_space=bias_space),
        ],
        out_specs=pl.BlockSpec((n_output, tile), lambda i: (0, i)),
        compiler_params=pltpu.CompilerParams(
            dimension_semantics=("parallel",)),
    )(x_t, w_prepared, b_prepared)

    # Back to the PyTorch (batch, n_output) convention; for n_output == 1 the
    # transpose is just a reshape.
    return out_t[:, :batch].T


if __name__ == "__main__":
    # Boston housing: 13 input features, 1 regression output.
    n_feature, n_output = 13, 1

    key = jax.random.PRNGKey(0)
    kx, kw, kb, kx2, kw2, kb2, kx3 = jax.random.split(key, 7)

    # Deterministic parameter init mimicking PyTorch Linear's default
    # U(-1/sqrt(fan_in), 1/sqrt(fan_in)).
    bound = 1.0 / jnp.sqrt(jnp.float32(n_feature))
    weight = jax.random.uniform(
        kw, (n_output, n_feature), jnp.float32, minval=-bound, maxval=bound)
    bias = jax.random.uniform(
        kb, (n_output,), jnp.float32, minval=-bound, maxval=bound)

    # Pay the layout cost exactly once, at "parameter load" time.
    w_prep, b_prep = prepare_params(weight, bias)

    # --- small batch: single-step grid, VPU n_output==1 path ----------------
    batch = 8
    x = jax.random.normal(kx, (batch, n_feature), dtype=jnp.float32)
    out = jax.block_until_ready(net_forward(x, w_prep, b_prep))
    ref = x @ weight.T + bias
    assert out.shape == (batch, n_output)
    assert jnp.allclose(out, ref, atol=1e-5, rtol=1e-5)

    # --- ragged medium batch: padded to 1024, split into 2 parallel steps ---
    batch2 = 1000
    x2 = jax.random.normal(kx2, (batch2, n_feature), dtype=jnp.float32)
    out2 = jax.block_until_ready(net_forward(x2, w_prep, b_prep))
    ref2 = x2 @ weight.T + bias
    assert out2.shape == (batch2, n_output)
    assert jnp.allclose(out2, ref2, atol=1e-5, rtol=1e-5)

    # --- general n_output > 1 path (MXU kernel, lane-dense output) ----------
    n_output2 = 4
    weight2 = jax.random.uniform(
        kw2, (n_output2, n_feature), jnp.float32, minval=-bound, maxval=bound)
    bias2 = jax.random.uniform(
        kb2, (n_output2,), jnp.float32, minval=-bound, maxval=bound)
    w2_prep, b2_prep = prepare_params(weight2, bias2)
    batch3 = 16
    x3 = jax.random.normal(kx3, (batch3, n_feature), dtype=jnp.float32)
    out3 = jax.block_until_ready(net_forward(x3, w2_prep, b2_prep))
    ref3 = x3 @ weight2.T + bias2
    assert out3.shape == (batch3, n_output2)
    assert jnp.allclose(out3, ref3, atol=1e-5, rtol=1e-5)

    print("KERNEL_OK")
</pallas_src>

<mosaic_0001>
module attributes {stable_mosaic.version = 11 : i64} {
  func.func @_linear_n1_kernel(%arg0: i32, %arg1: memref<13x128xf32, #tpu.memory_space<vmem>>, %arg2: memref<13x1xf32, #tpu.memory_space<vmem>>, %arg3: memref<1xf32, #tpu.memory_space<smem>>, %arg4: memref<1x128xf32, #tpu.memory_space<vmem>>) attributes {dimension_semantics = [#tpu.dimension_semantics<parallel>], iteration_bounds = array<i64: 1>, scalar_prefetch = 0 : i64, scratch_operands = 0 : i64, tpu.core_type = #tpu.core_type<tc>, window_params = [{transform_indices = @transform_0, window_bounds = array<i64: 13, 128>}, {pipeline_mode = #tpu.pipeline_mode<synchronous>, transform_indices = @transform_1, window_bounds = array<i64: 13, 1>}, {transform_indices = @transform_2, window_bounds = array<i64: 1>}, {transform_indices = @transform_3, window_bounds = array<i64: 1, 128>}]} {
    %c0 = arith.constant 0 : index
    %c0_0 = arith.constant 0 : index
    %0 = vector.load %arg1[%c0, %c0_0] : memref<13x128xf32, #tpu.memory_space<vmem>>, vector<13x128xf32>
    %c0_1 = arith.constant 0 : index
    %c0_2 = arith.constant 0 : index
    %1 = vector.load %arg2[%c0_1, %c0_2] : memref<13x1xf32, #tpu.memory_space<vmem>>, vector<13x1xf32>
    %2 = vector.broadcast %1 : vector<13x1xf32> to vector<13x128xf32>
    %3 = arith.mulf %0, %2 : vector<13x128xf32>
    %cst = arith.constant dense<0.000000e+00> : vector<128xf32>
    %4 = vector.multi_reduction <add>, %3, %cst [0] : vector<13x128xf32> to vector<128xf32>
    %5 = vector.shape_cast %4 : vector<128xf32> to vector<1x128xf32>
    %c0_3 = arith.constant 0 : index
    %6 = memref.load %arg3[%c0_3] : memref<1xf32, #tpu.memory_space<smem>>
    %7 = vector.broadcast %6 : f32 to vector<1x128xf32>
    %8 = arith.addf %5, %7 : vector<1x128xf32>
    %c0_4 = arith.constant 0 : index
    %c0_5 = arith.constant 0 : index
    %9 = vector.load %arg4[%c0_4, %c0_5] : memref<1x128xf32, #tpu.memory_space<vmem>>, vector<1x128xf32>
    tpu.vector_store %arg4[%c0_4, %c0_5], %8 {strides = array<i32>} : memref<1x128xf32, #tpu.memory_space<vmem>>, vector<1x128xf32>,
    return
  }
  func.func @transform_0(%arg0: i32) -> (i32, i32) {
    %c0_i32 = arith.constant 0 : i32
    %c0_i32_0 = arith.constant 0 : i32
    return %c0_i32, %arg0 : i32, i32
  }
  func.func @transform_1(%arg0: i32) -> (i32, i32) {
    %c0_i32 = arith.constant 0 : i32
    %c0_i32_0 = arith.constant 0 : i32
    %c0_i32_1 = arith.constant 0 : i32
    return %c0_i32, %c0_i32_0 : i32, i32
  }
  func.func @transform_2(%arg0: i32) -> i32 {
    %c0_i32 = arith.constant 0 : i32
    %c0_i32_0 = arith.constant 0 : i32
    return %c0_i32 : i32
  }
  func.func @transform_3(%arg0: i32) -> (i32, i32) {
    %c0_i32 = arith.constant 0 : i32
    %c0_i32_0 = arith.constant 0 : i32
    return %c0_i32, %arg0 : i32, i32
  }
}

</mosaic_0001>

<llo_original>
// kernel: tpu_custom_call.1
$region0: #{tpu_custom_call.1}
  #allocation0 [shape = 'u32[]', space=smem, size = 0x4, offset = 0x4, fixed_abs, tag = 'smem constant byte address 0x4 - core index']
  #allocation1 [shape = 'u32[72,128]{1,0:T(1,128)}', space=vmem, size = 0x9000, scoped, tag = 'internal scratch']
  #allocation2 [shape = 'f32[1]{0:T(128)S(6)}', space=smem, size = 0x200, scoped, tag = 'scoped memory for tpu_custom_call.1']
  %s0 = inlined_call_operand.vmem [shape: f32[13,128], index: 0, kind: input, shape index: {}]
  %s1 = inlined_call_operand.vmem [shape: f32[13,1], index: 1, kind: input, shape index: {}]
  %s2 = inlined_call_operand.<no memory space> [shape: f32[1], index: 2, kind: input, shape index: {}]
  %s3 = inlined_call_operand.hbm [shape: f32[1,128], index: 3, kind: output, shape index: {}]
  %s4 = sld [smem:[#allocation0]]
  $region22: #{tpu_custom_call.1} parent=0
    _
  %s6 = ssub.s32 1, %s4
  %s7 = scalar_select 0, %s6, %s4
  %8 = sst [smem:[#allocation2]] %s2
  $region1: #{tpu_custom_call.1} parent=0
    #allocation3 [shape = 'u8[512]{0}', space=vmem, size = 0x400, scoped, tag = 'output window, operand 0, single buffered']
    #allocation4 [shape = 's32[1]{0}', space=sflag, size = 0x4, scoped, tag = 'scoped memory for tpu_custom_call.1']
    %9 = vsyncpa [#allocation4], 0
    // Predicated region
    $region2: #{tpu_custom_call.1} parent=1 // pred_check
      _
    $region3: #{tpu_custom_call.1} parent=1 // pred_check_branch
      %11 = sbr.rel (0) target = $region5
    $region4: #{tpu_custom_call.1} parent=1 // pred_region
      _
    $region5: #{tpu_custom_call.1} parent=1 // pred_fallthru
      _
    // Predicated region
    $region6: #{tpu_custom_call.1} parent=1 // pred_check
      _
    $region7: #{tpu_custom_call.1} parent=1 // pred_check_branch
      %13 = sbr.rel (0) target = $region9
    $region8: #{tpu_custom_call.1} parent=1 // pred_region
      _
    $region9: #{tpu_custom_call.1} parent=1 // pred_fallthru
      _
    // Predicated region
    $region10: #{tpu_custom_call.1} parent=1 // pred_check
      _
    $region11: #{tpu_custom_call.1} parent=1 // pred_check_branch
      %15 = sbr.rel (0) target = $region13
    $region12: #{tpu_custom_call.1} parent=1 // pred_region
      _
    $region13: #{tpu_custom_call.1} parent=1 // pred_fallthru
      _
    %v16 = vld [vmem:[%s0] sm:$0xff]
    %v17 = vld [vmem:[%s0 + $0x8] sm:$0x1f]
    %v18 = vld [vmem:[%s1] sm:$0xff]
    %v19 = vld [vmem:[%s1 + $0x8] sm:$0x1f]
    %21 = vset.pattern.permute.xlu0 0
    %22 = vperm.xlu0 %21, %v18
    %v23 = vpop.permute.xlu0 %22
    %26 = vset.pattern.permute.xlu0 0
    %27 = vperm.xlu0 %26, %v19
    %v28 = vpop.permute.xlu0 %27
    %v30 = vmul.f32 %v16, %v23
    %v31 = vmul.f32 %v17, %v28
    %vm32 = vcmask 1044480
    %v33 = vsel %vm32, %v31, 0.0
    %v34 = vadd.f32 %v30, %v33
    %v35 = vrot.slane %v34, 4
    %v36 = vadd.f32 %v34, %v35
    %v37 = vrot.slane %v36, 2
    %v38 = vadd.f32 %v36, %v37
    %v39 = vrot.slane %v38, 1
    %v40 = vadd.f32 %v38, %v39
    %s41 = sld [smem:[#allocation2]]
    %v42 = vstv %s41
    %v43 = vadd.f32 %v40, %v42
    %44 = vst [vmem:[#allocation3] sm:$0x1] %v43
    // Predicated region
    $region14: #{tpu_custom_call.1} parent=1 // pred_check
      _
    $region15: #{tpu_custom_call.1} parent=1 // pred_check_branch
      %46 = sbr.rel (0) target = $region17
    $region16: #{tpu_custom_call.1} parent=1 // pred_region
      %48 = vsyncadd [#allocation4], 0
      %s50 = sshll.u32 [#allocation3], 4
      %s51 = int_to_ptr.vmem [resolvable:$true] %s50
      %s52 = sshll.u32 %s3, 4
      %s53 = int_to_ptr.hbm [resolvable:$true] %s52
      %55 = dma.vmem_to_hbm [thread:$0]  %s51, 16, %s53, [#allocation4]
    $region17: #{tpu_custom_call.1} parent=1 // pred_fallthru
      _
    // Predicated region
    $region18: #{tpu_custom_call.1} parent=1 // pred_check
      _
    $region19: #{tpu_custom_call.1} parent=1 // pred_check_branch
      %57 = sbr.rel (0) target = $region21
    $region20: #{tpu_custom_call.1} parent=1 // pred_region
      %59 = dma.done [#allocation4], 16
    $region21: #{tpu_custom_call.1} parent=1 // pred_fallthru
      _
    %60 = vsyncpa [#allocation4], 1

</llo_original>
